<compile_context>
chip_gen: v5e
topology: v5e:2x2
jax: 0.10.0
libtpu: 0.0.40
codegen_flags: <defaults>
</compile_context>

<pallas_src>
import functools
import math

import jax
import jax.numpy as jnp
from jax.experimental import pallas as pl
from jax.experimental.pallas import tpu as pltpu

_LANE = 512             # lane-dense last dim (multiple of 128)
_MAX_BLOCK_ROWS = 2048  # 2048 x 512 x 4 B = 4 MiB per f32 tile


def _round_up(v, m):
    return ((v + m - 1) // m) * m


def _pick_block_rows(rows, itemsize):
    """Largest block that fits VMEM comfortably, sublane-pack aligned,
    while keeping >= 2 grid steps when there is enough work (v7x megacore)."""
    pack = max(8, 32 // max(1, int(itemsize)))   # f32->8, bf16->16, int8/fp8->32
    if rows < 2 * pack:
        return rows                              # single full-extent block
    block = min(_MAX_BLOCK_ROWS, _round_up(rows, pack))
    if block >= rows:                            # would collapse to grid==(1,)
        block = _round_up(pl.cdiv(rows, 2), pack)
    return block


def _sigmoid_fast(z):
    # Explicit sigmoid: one EUP exp + one approx EUP reciprocal; one VALU
    # min keeps the approx result inside [0, 1].
    return jnp.minimum(pl.reciprocal(1.0 + jnp.exp(-z), approx=True), 1.0)


def _uniform_pieces(shape, s, c1, c2):
    """Return (u + eps, 1 - u + eps) for u ~ U[u_min, u_max) via the HW PRNG.

    m = 1.mantissa in [1, 2) from 23 random bits; eps/u_min/u_max are folded
    into the compile-time constants c1, c2 so only ~3 VALU ops remain.
    """
    bits = pltpu.prng_random_bits(shape)
    ubits = pltpu.bitcast(bits, jnp.uint32)
    m = pltpu.bitcast((ubits >> jnp.uint32(9)) | jnp.uint32(0x3F800000),
                      jnp.float32)
    sm = m if s == 1.0 else jnp.float32(s) * m
    return sm + jnp.float32(c1), jnp.float32(c2) - sm


def _concrete_tpu_prng_kernel(seed_ref, x_ref, out_ref, *,
                              inv_t, u_min, u_max, eps):
    # One distinct PRNG stream per grid block: fold (host_seed, block_id).
    pltpu.prng_seed(seed_ref[0], pl.program_id(0))
    x = x_ref[...].astype(jnp.float32)
    s = u_max - u_min
    c1 = u_min - s + eps          # u + eps     = s*m + c1   (m in [1, 2))
    c2 = 1.0 - u_min + s + eps    # 1 - u + eps = c2 - s*m
    u_pe, omu_pe = _uniform_pieces(x_ref.shape, s, c1, c2)
    # Single log: log(x+eps) + log(u+eps) - log(1-u+eps) == log of the ratio.
    ratio = (x + eps) * u_pe * pl.reciprocal(omu_pe, approx=True)
    out_ref[...] = _sigmoid_fast(jnp.log(ratio) * inv_t).astype(out_ref.dtype)


def _concrete_det_kernel(x_ref, out_ref, *, inv_t, eps):
    # randomized=False: u == 0.5 exactly, so log(u+eps) - log(1-u+eps) == 0.
    x = x_ref[...].astype(jnp.float32)
    out_ref[...] = _sigmoid_fast(jnp.log(x + eps) * inv_t).astype(out_ref.dtype)


def _concrete_hostnoise_kernel(x_ref, u_ref, out_ref, *, inv_t, eps):
    # Fallback for non-TPU backends (no HW PRNG lowering); perf-irrelevant.
    x = x_ref[...].astype(jnp.float32)
    u = u_ref[...]
    ratio = (x + eps) * (u + eps) / (1.0 - u + eps)
    out_ref[...] = jax.nn.sigmoid(jnp.log(ratio) * inv_t).astype(out_ref.dtype)


def concrete_forward(x, step, key, *, randomized=True,
                     tmp=0.9, u_min=0.0, u_max=1.0, eps=1e-8,
                     t_min=0.0, gamma=1.0, anneal_step=4000):
    """JAX/Pallas equivalent of Concrete.forward(x, step, randomized)."""
    # Temperature annealing is pure python scalar math in the PyTorch module.
    t = max(t_min, tmp * math.exp(-gamma * (step // anneal_step * anneal_step)))
    # Mirrors torch's prob / 0 semantics when t underflows to 0 (NaN-prone).
    inv_t = (1.0 / t) if t > 0.0 else float("inf")

    orig_shape, orig_dtype = x.shape, x.dtype
    n = x.size

    # Lane-dense 2D slab.  Pad only the sub-_LANE remainder; the common
    # divisible case has no pad and no epilogue slice (just free reshapes).
    xf = x.reshape(-1)
    pad = (-n) % _LANE
    if pad:
        xf = jnp.pad(xf, (0, pad), constant_values=0.5)  # 0.5 is log-safe
    rows = (n + pad) // _LANE
    x2 = xf.reshape(rows, _LANE)

    block_rows = _pick_block_rows(rows, orig_dtype.itemsize)
    grid = (pl.cdiv(rows, block_rows),)   # partial last row-block is masked
    blk = pl.BlockSpec((block_rows, _LANE), lambda i: (i, 0))
    smem = pl.BlockSpec(memory_space=pltpu.MemorySpace.SMEM)
    out_shape = jax.ShapeDtypeStruct((rows, _LANE), orig_dtype)
    cparams = pltpu.CompilerParams(dimension_semantics=("parallel",))

    if not randomized:
        out = pl.pallas_call(
            functools.partial(_concrete_det_kernel,
                              inv_t=float(inv_t), eps=float(eps)),
            out_shape=out_shape,
            grid_spec=pltpu.PrefetchScalarGridSpec(
                num_scalar_prefetch=0, grid=grid,
                in_specs=[blk], out_specs=blk),
            compiler_params=cparams,
        )(x2)
    elif jax.default_backend() == "tpu":
        seed = jax.random.randint(key, (1,), 0, 2**31 - 1, dtype=jnp.int32)
        out = pl.pallas_call(
            functools.partial(_concrete_tpu_prng_kernel,
                              inv_t=float(inv_t), u_min=float(u_min),
                              u_max=float(u_max), eps=float(eps)),
            out_shape=out_shape,
            grid_spec=pltpu.PrefetchScalarGridSpec(
                num_scalar_prefetch=0, grid=grid,
                in_specs=[smem, blk], out_specs=blk),
            compiler_params=cparams,
        )(seed, x2)
    else:
        # Non-TPU backend / interpret: draw the uniform noise host-side.
        u = jax.random.uniform(key, (rows, _LANE), dtype=jnp.float32,
                               minval=u_min, maxval=u_max)
        out = pl.pallas_call(
            functools.partial(_concrete_hostnoise_kernel,
                              inv_t=float(inv_t), eps=float(eps)),
            out_shape=out_shape,
            grid_spec=pltpu.PrefetchScalarGridSpec(
                num_scalar_prefetch=0, grid=grid,
                in_specs=[blk, blk], out_specs=blk),
            compiler_params=cparams,
        )(x2, u)

    if pad:
        prob = out.reshape(-1)[:n].reshape(orig_shape)
    else:
        prob = out.reshape(orig_shape)
    return prob, t


if __name__ == "__main__":
    key = jax.random.PRNGKey(0)
    kx, knoise = jax.random.split(key)

    # Concrete dropout gates a probability-like tensor; use [0, 1] inputs.
    x = jax.random.uniform(kx, (2, 4, 16, 16), dtype=jnp.float32)
    # Small step keeps the annealed temperature at tmp=0.9; very large steps
    # underflow t to 0 (divide-by-zero), inherent to the reference semantics.
    step = 100

    # randomized path
    prob, t = concrete_forward(x, step, knoise, randomized=True)
    prob = jax.block_until_ready(prob)
    assert prob.shape == x.shape and prob.dtype == x.dtype
    assert bool(jnp.all(jnp.isfinite(prob)))
    assert bool(jnp.all((prob >= 0.0) & (prob <= 1.0)))

    # deterministic path (u_noise = 0.5) against the closed-form reference.
    # Tolerance accounts for the in-kernel approx EUP reciprocals.
    prob_det, t_det = concrete_forward(x, step, knoise, randomized=False)
    prob_det = jax.block_until_ready(prob_det)
    eps = 1e-8
    ref = jax.nn.sigmoid((jnp.log(x + eps) + jnp.log(0.5 + eps)
                          - jnp.log(1.0 - 0.5 + eps)) / t_det)
    assert bool(jnp.allclose(prob_det, ref, atol=2e-3, rtol=2e-3))

    expected_t = max(0.0, 0.9 * math.exp(-1.0 * (step // 4000 * 4000)))
    assert abs(t - expected_t) < 1e-12

    print("KERNEL_OK")
</pallas_src>

<mosaic_0001>
module attributes {stable_mosaic.version = 11 : i64} {
  func.func @_concrete_hostnoise_kernel(%arg0: i32, %arg1: memref<4x512xf32, #tpu.memory_space<vmem>>, %arg2: memref<4x512xf32, #tpu.memory_space<vmem>>, %arg3: memref<4x512xf32, #tpu.memory_space<vmem>>) attributes {dimension_semantics = [#tpu.dimension_semantics<parallel>], iteration_bounds = array<i64: 1>, scalar_prefetch = 0 : i64, scratch_operands = 0 : i64, tpu.core_type = #tpu.core_type<tc>, window_params = [{transform_indices = @transform_0, window_bounds = array<i64: 4, 512>}, {transform_indices = @transform_1, window_bounds = array<i64: 4, 512>}, {transform_indices = @transform_2, window_bounds = array<i64: 4, 512>}]} {
    %c0 = arith.constant 0 : index
    %c0_0 = arith.constant 0 : index
    %0 = vector.load %arg1[%c0, %c0_0] : memref<4x512xf32, #tpu.memory_space<vmem>>, vector<4x512xf32>
    %c0_1 = arith.constant 0 : index
    %c0_2 = arith.constant 0 : index
    %1 = vector.load %arg2[%c0_1, %c0_2] : memref<4x512xf32, #tpu.memory_space<vmem>>, vector<4x512xf32>
    %cst = arith.constant 9.99999993E-9 : f32
    %2 = vector.broadcast %cst : f32 to vector<4x512xf32>
    %3 = arith.addf %0, %2 : vector<4x512xf32>
    %cst_3 = arith.constant 9.99999993E-9 : f32
    %4 = vector.broadcast %cst_3 : f32 to vector<4x512xf32>
    %5 = arith.addf %1, %4 : vector<4x512xf32>
    %6 = arith.mulf %3, %5 : vector<4x512xf32>
    %cst_4 = arith.constant 1.000000e+00 : f32
    %7 = vector.broadcast %cst_4 : f32 to vector<4x512xf32>
    %8 = arith.subf %7, %1 : vector<4x512xf32>
    %cst_5 = arith.constant 9.99999993E-9 : f32
    %9 = vector.broadcast %cst_5 : f32 to vector<4x512xf32>
    %10 = arith.addf %8, %9 : vector<4x512xf32>
    %11 = arith.divf %6, %10 : vector<4x512xf32>
    %12 = math.log %11 : vector<4x512xf32>
    %cst_6 = arith.constant 1.11111116 : f32
    %13 = vector.broadcast %cst_6 : f32 to vector<4x512xf32>
    %14 = arith.mulf %12, %13 : vector<4x512xf32>
    %15 = arith.negf %14 : vector<4x512xf32>
    %16 = math.exp %15 : vector<4x512xf32>
    %cst_7 = arith.constant 1.000000e+00 : f32
    %17 = vector.broadcast %cst_7 : f32 to vector<4x512xf32>
    %18 = arith.addf %17, %16 : vector<4x512xf32>
    %19 = arith.divf %17, %18 : vector<4x512xf32>
    %c0_8 = arith.constant 0 : index
    %c0_9 = arith.constant 0 : index
    %20 = vector.load %arg3[%c0_8, %c0_9] : memref<4x512xf32, #tpu.memory_space<vmem>>, vector<4x512xf32>
    tpu.vector_store %arg3[%c0_8, %c0_9], %19 {strides = array<i32>} : memref<4x512xf32, #tpu.memory_space<vmem>>, vector<4x512xf32>,
    return
  }
  func.func @transform_0(%arg0: i32) -> (i32, i32) {
    %c0_i32 = arith.constant 0 : i32
    %c0_i32_0 = arith.constant 0 : i32
    return %arg0, %c0_i32 : i32, i32
  }
  func.func @transform_1(%arg0: i32) -> (i32, i32) {
    %c0_i32 = arith.constant 0 : i32
    %c0_i32_0 = arith.constant 0 : i32
    return %arg0, %c0_i32 : i32, i32
  }
  func.func @transform_2(%arg0: i32) -> (i32, i32) {
    %c0_i32 = arith.constant 0 : i32
    %c0_i32_0 = arith.constant 0 : i32
    return %arg0, %c0_i32 : i32, i32
  }
}

</mosaic_0001>

<llo_original>
// kernel: tpu_custom_call.1
$region0: #{tpu_custom_call.1}
  #allocation0 [shape = 'u32[]', space=smem, size = 0x4, offset = 0x4, fixed_abs, tag = 'smem constant byte address 0x4 - core index']
  #allocation1 [shape = 'u32[72,128]{1,0:T(1,128)}', space=vmem, size = 0x9000, scoped, tag = 'internal scratch']
  %s0 = inlined_call_operand.hbm [shape: f32[4,512], index: 0, kind: input, shape index: {}]
  %s1 = inlined_call_operand.hbm [shape: f32[4,512], index: 1, kind: input, shape index: {}]
  %s2 = inlined_call_operand.hbm [shape: f32[4,512], index: 2, kind: output, shape index: {}]
  %s3 = sld [smem:[#allocation0]]
  $region26: #{tpu_custom_call.1} parent=0
    _
  %s5 = ssub.s32 1, %s3
  %s6 = scalar_select 0, %s5, %s3
  $region1: #{tpu_custom_call.1} parent=0
    #allocation2 [shape = 'u8[8192]{0}', space=vmem, size = 0x2000, scoped, tag = 'input window, operand 0, single buffered']
    #allocation3 [shape = 's32[1]{0}', space=sflag, size = 0x4, scoped, tag = 'scoped memory for tpu_custom_call.1']
    #allocation4 [shape = 's32[1]{0}', space=sflag, size = 0x4, scoped, tag = 'scoped memory for tpu_custom_call.1']
    #allocation5 [shape = 'u8[8192]{0}', space=vmem, size = 0x2000, scoped, tag = 'input window, operand 1, single buffered']
    #allocation6 [shape = 's32[1]{0}', space=sflag, size = 0x4, scoped, tag = 'scoped memory for tpu_custom_call.1']
    #allocation7 [shape = 'u8[8192]{0}', space=vmem, size = 0x2000, scoped, tag = 'output window, operand 0, single buffered']
    %7 = vsyncpa [#allocation3], 0
    %8 = vsyncpa [#allocation6], 0
    %9 = vsyncpa [#allocation4], 0
    // Predicated region
    $region2: #{tpu_custom_call.1} parent=1 // pred_check
      _
    $region3: #{tpu_custom_call.1} parent=1 // pred_check_branch
      %11 = sbr.rel (0) target = $region5
    $region4: #{tpu_custom_call.1} parent=1 // pred_region
      %13 = vsyncadd [#allocation3], 0
      %s15 = sshll.u32 %s0, 4
      %s16 = int_to_ptr.hbm [resolvable:$true] %s15
      %s17 = sshll.u32 [#allocation2], 4
      %s18 = int_to_ptr.vmem [resolvable:$true] %s17
      %20 = dma.hbm_to_vmem [thread:$0]  %s16, 256, %s18, [#allocation3]
    $region5: #{tpu_custom_call.1} parent=1 // pred_fallthru
      _
    // Predicated region
    $region6: #{tpu_custom_call.1} parent=1 // pred_check
      _
    $region7: #{tpu_custom_call.1} parent=1 // pred_check_branch
      %22 = sbr.rel (0) target = $region9
    $region8: #{tpu_custom_call.1} parent=1 // pred_region
      %24 = vsyncadd [#allocation6], 0
      %s26 = sshll.u32 %s1, 4
      %s27 = int_to_ptr.hbm [resolvable:$true] %s26
      %s28 = sshll.u32 [#allocation5], 4
      %s29 = int_to_ptr.vmem [resolvable:$true] %s28
      %31 = dma.hbm_to_vmem [thread:$0]  %s27, 256, %s29, [#allocation6]
    $region9: #{tpu_custom_call.1} parent=1 // pred_fallthru
      _
    // Predicated region
    $region10: #{tpu_custom_call.1} parent=1 // pred_check
      _
    $region11: #{tpu_custom_call.1} parent=1 // pred_check_branch
      %33 = sbr.rel (0) target = $region13
    $region12: #{tpu_custom_call.1} parent=1 // pred_region
      %35 = dma.done [#allocation3], 256
    $region13: #{tpu_custom_call.1} parent=1 // pred_fallthru
      _
    // Predicated region
    $region14: #{tpu_custom_call.1} parent=1 // pred_check
      _
    $region15: #{tpu_custom_call.1} parent=1 // pred_check_branch
      %37 = sbr.rel (0) target = $region17
    $region16: #{tpu_custom_call.1} parent=1 // pred_region
      %39 = dma.done [#allocation6], 256
    $region17: #{tpu_custom_call.1} parent=1 // pred_fallthru
      _
    %v40 = vld [vmem:[#allocation2] sm:$0xff]
    %v41 = vld [vmem:[#allocation2 + $0x8] sm:$0xff]
    %v42 = vld [vmem:[#allocation5] sm:$0xff]
    %v43 = vld [vmem:[#allocation5 + $0x8] sm:$0xff]
    %v44 = vadd.f32 %v40, 1e-08
    %v45 = vadd.f32 %v41, 1e-08
    %v46 = vadd.f32 %v42, 1e-08
    %v47 = vadd.f32 %v43, 1e-08
    %v48 = vmul.f32 %v44, %v46
    %v49 = vmul.f32 %v45, %v47
    %v50 = vsub.f32 1.0, %v42
    %v51 = vsub.f32 1.0, %v43
    %v52 = vadd.f32 %v50, 1e-08
    %v53 = vadd.f32 %v51, 1e-08
    %v54 = vrcp.pop %v52
    %v55 = vmul.f32 %v52, %v54
    %v56 = vsub.f32 1.0, %v55
    %v57 = vmul.f32 %v54, %v56
    %v58 = vadd.f32 %v54, %v57
    %vm59 = vweird.f32 %v52
    %vm60 = vweird.f32 %v54
    %vm61 = vmor %vm59, %vm60
    %v62 = vsel %vm61, %v54, %v58
    %v63 = vand.u32 2147483647, %v52
    %vm64 = vcmp.eq.f32.partialorder %v63, 8.507059e+37
    %v65 = vand.u32 %v52, 2147483648
    %v66 = vor.u32 1.1754944e-38, %v65
    %v67 = vsel %vm64, %v66, %v62
    %v68 = vmul.f32 %v48, %v67
    %v69 = vrcp.pop %v53
    %v70 = vmul.f32 %v53, %v69
    %v71 = vsub.f32 1.0, %v70
    %v72 = vmul.f32 %v69, %v71
    %v73 = vadd.f32 %v69, %v72
    %vm74 = vweird.f32 %v53
    %vm75 = vweird.f32 %v69
    %vm76 = vmor %vm74, %vm75
    %v77 = vsel %vm76, %v69, %v73
    %v78 = vand.u32 2147483647, %v53
    %vm79 = vcmp.eq.f32.partialorder %v78, 8.507059e+37
    %v80 = vand.u32 %v53, 2147483648
    %v81 = vor.u32 1.1754944e-38, %v80
    %v82 = vsel %vm79, %v81, %v77
    %v83 = vmul.f32 %v49, %v82
    %v84 = vlog2.pop %v68
    %v85 = vmul.f32 %v84, 0.6931472
    %v86 = vlog2.pop %v83
    %v87 = vmul.f32 %v86, 0.6931472
    %v88 = vmul.f32 %v85, 1.1111112
    %v89 = vmul.f32 %v87, 1.1111112
    %v90 = vxor.u32 %v88, 2147483648
    %v91 = vxor.u32 %v89, 2147483648
    %v92 = vmul.f32 %v90, 1.442695
    %v93 = vpow.pop %v92
    %v94 = vmul.f32 %v91, 1.442695
    %v95 = vpow.pop %v94
    %v96 = vadd.f32 %v93, 1.0
    %v97 = vadd.f32 %v95, 1.0
    %v98 = vrcp.pop %v96
    %v99 = vmul.f32 %v96, %v98
    %v100 = vsub.f32 1.0, %v99
    %v101 = vmul.f32 %v98, %v100
    %v102 = vadd.f32 %v98, %v101
    %vm103 = vweird.f32 %v96
    %vm104 = vweird.f32 %v98
    %vm105 = vmor %vm103, %vm104
    %v106 = vsel %vm105, %v98, %v102
    %v107 = vand.u32 2147483647, %v96
    %vm108 = vcmp.eq.f32.partialorder %v107, 8.507059e+37
    %v109 = vand.u32 %v96, 2147483648
    %v110 = vor.u32 1.1754944e-38, %v109
    %v111 = vsel %vm108, %v110, %v106
    %v112 = vmul.f32 1.0, %v111
    %v113 = vrcp.pop %v97
    %v114 = vmul.f32 %v97, %v113
    %v115 = vsub.f32 1.0, %v114
    %v116 = vmul.f32 %v113, %v115
    %v117 = vadd.f32 %v113, %v116
    %vm118 = vweird.f32 %v97
    %vm119 = vweird.f32 %v113
    %vm120 = vmor %vm118, %vm119
    %v121 = vsel %vm120, %v113, %v117
    %v122 = vand.u32 2147483647, %v97
    %vm123 = vcmp.eq.f32.partialorder %v122, 8.507059e+37
    %v124 = vand.u32 %v97, 2147483648
    %v125 = vor.u32 1.1754944e-38, %v124
    %v126 = vsel %vm123, %v125, %v121
    %v127 = vmul.f32 1.0, %v126
    %128 = vst [vmem:[#allocation7] sm:$0xff] %v112
    %129 = vst [vmem:[#allocation7 + $0x8] sm:$0xff] %v127
    // Predicated region
    $region18: #{tpu_custom_call.1} parent=1 // pred_check
      _
    $region19: #{tpu_custom_call.1} parent=1 // pred_check_branch
      %131 = sbr.rel (0) target = $region21
    $region20: #{tpu_custom_call.1} parent=1 // pred_region
      %133 = vsyncadd [#allocation4], 0
      %s135 = sshll.u32 [#allocation7], 4
      %s136 = int_to_ptr.vmem [resolvable:$true] %s135
      %s137 = sshll.u32 %s2, 4
      %s138 = int_to_ptr.hbm [resolvable:$true] %s137
      %140 = dma.vmem_to_hbm [thread:$0]  %s136, 256, %s138, [#allocation4]
    $region21: #{tpu_custom_call.1} parent=1 // pred_fallthru
      _
    // Predicated region
    $region22: #{tpu_custom_call.1} parent=1 // pred_check
      _
    $region23: #{tpu_custom_call.1} parent=1 // pred_check_branch
      %142 = sbr.rel (0) target = $region25
    $region24: #{tpu_custom_call.1} parent=1 // pred_region
      %144 = dma.done [#allocation4], 256
    $region25: #{tpu_custom_call.1} parent=1 // pred_fallthru
      _
    %145 = vsyncpa [#allocation3], 1
    %146 = vsyncpa [#allocation6], 1
    %147 = vsyncpa [#allocation4], 1

</llo_original>
